<compile_context>
chip_gen: v5e
topology: v5e:2x2
jax: 0.10.0
libtpu: 0.0.40
codegen_flags: <defaults>
</compile_context>

<pallas_src>
import jax
import jax.numpy as jnp
from jax.experimental import pallas as pl
from jax.experimental.pallas import tpu as pltpu

IN_DIM = 28 * 28
H1, H2, H3, OUT = 128, 64, 64, 10
H_PAD = 128             # padded hidden / output lane width (lane-dense vregs)
OUT_PAD = 128
TILE_B_DEFAULT = 512    # sweep 512-2048 on v6e/v7x; keep <=1024 on v5e


def _round_up(n, m):
    return ((n + m - 1) // m) * m


def mlp_kernel(x_ref, w1_ref, b1_ref, w2_ref, b2_ref,
               w3_ref, b3_ref, w4_ref, b4_ref, o_ref):
    # x arrives f32 from HBM; cast to bf16 in-VMEM (no extra HBM round-trip).
    x = x_ref[...].astype(jnp.bfloat16)
    # hidden1 + relu  (bf16 MXU inputs, f32 accumulation)
    h = jnp.dot(x, w1_ref[...], preferred_element_type=jnp.float32)
    h = jnp.maximum(h + b1_ref[...], 0.0)
    # hidden2 + sigmoid (EUP exp + EUP approx reciprocal)
    h = jnp.dot(h.astype(jnp.bfloat16), w2_ref[...],
                preferred_element_type=jnp.float32)
    h = h + b2_ref[...]
    h = pl.reciprocal(1.0 + jnp.exp(-h), approx=True)
    # hidden3 + relu
    h = jnp.dot(h.astype(jnp.bfloat16), w3_ref[...],
                preferred_element_type=jnp.float32)
    h = jnp.maximum(h + b3_ref[...], 0.0)
    # out (padded to 128 lanes, no activation), bf16 lane-dense store
    h = jnp.dot(h.astype(jnp.bfloat16), w4_ref[...],
                preferred_element_type=jnp.float32)
    o_ref[...] = (h + b4_ref[...]).astype(o_ref.dtype)


def neural_network_forward(x_nchw, params, tile_b=TILE_B_DEFAULT):
    """Forward pass of the PyTorch NeuralNetwork module.

    x_nchw: (B, 1, 28, 28) float32
    params: dict with w1..w4 shaped (in, out) and b1..b4 shaped (1, out), float32
    returns: (B, 10) float32 logits
    """
    B = x_nchw.shape[0]
    x = x_nchw.reshape(B, IN_DIM)                 # nn.Flatten; stays f32

    # Batch tile: multiple of 16 (bf16 sublane packing of the output block).
    tb = max(16, min(tile_b, _round_up(B, 16)))
    grid = (pl.cdiv(B, tb),)                      # ragged last block is fine:
                                                  # rows are independent, OOB
                                                  # writes are discarded.

    # Weights: bf16, (in, out).  Hidden dims 64 zero-padded to 128 so all
    # intermediate activations are full-lane vregs.  Zero padding is exact
    # because the padded *input rows* of the following weight are zero.
    w1 = params["w1"].astype(jnp.bfloat16)                                   # (784,128)
    w2 = jnp.pad(params["w2"].astype(jnp.bfloat16), ((0, 0), (0, H_PAD - H2)))       # (128,128)
    w3 = jnp.pad(params["w3"].astype(jnp.bfloat16), ((0, H_PAD - H2), (0, H_PAD - H3)))  # (128,128)
    w4 = jnp.pad(params["w4"].astype(jnp.bfloat16), ((0, H_PAD - H3), (0, OUT_PAD - OUT)))  # (128,128)
    b1 = params["b1"]                                                        # f32, added to f32 acc
    b2 = jnp.pad(params["b2"], ((0, 0), (0, H_PAD - H2)))
    b3 = jnp.pad(params["b3"], ((0, 0), (0, H_PAD - H3)))
    b4 = jnp.pad(params["b4"], ((0, 0), (0, OUT_PAD - OUT)))

    def resident(shape):
        # Constant index_map -> weight/bias block stays resident across grid steps.
        return pl.BlockSpec(shape, lambda i: (0, 0))

    # CostEstimate for f32-x-in / bf16-out traffic (padded layer sizes).
    flops = 2 * B * (IN_DIM * H1 + H1 * H_PAD + H_PAD * H_PAD + H_PAD * OUT_PAD)
    weight_bytes = 2 * (IN_DIM * H1 + H1 * H_PAD + H_PAD * H_PAD + H_PAD * OUT_PAD) \
        + 4 * (H1 + 3 * H_PAD)
    bytes_accessed = B * IN_DIM * 4 + weight_bytes + B * OUT_PAD * 2
    cost = pl.CostEstimate(flops=flops,
                           transcendentals=B * H_PAD,
                           bytes_accessed=bytes_accessed)

    out = pl.pallas_call(
        mlp_kernel,
        out_shape=jax.ShapeDtypeStruct((B, OUT_PAD), jnp.bfloat16),
        grid=grid,
        in_specs=[
            pl.BlockSpec((tb, IN_DIM), lambda i: (i, 0)),   # x: tiled over batch (f32)
            resident((IN_DIM, H1)),     resident((1, H1)),
            resident((H1, H_PAD)),      resident((1, H_PAD)),
            resident((H_PAD, H_PAD)),   resident((1, H_PAD)),
            resident((H_PAD, OUT_PAD)), resident((1, OUT_PAD)),
        ],
        out_specs=pl.BlockSpec((tb, OUT_PAD), lambda i: (i, 0)),
        compiler_params=pltpu.CompilerParams(
            dimension_semantics=("parallel",)),
        cost_estimate=cost,
    )(x, w1, b1, w2, b2, w3, b3, w4, b4)

    # Slice off the lane padding; return f32 logits like the PyTorch module.
    return out[:, :OUT].astype(jnp.float32)


def init_params(key):
    """Deterministic parameter init (Kaiming-uniform-ish, like nn.Linear)."""
    dims = [(IN_DIM, H1), (H1, H2), (H2, H3), (H3, OUT)]
    params = {}
    keys = jax.random.split(key, 2 * len(dims))
    for i, (fan_in, fan_out) in enumerate(dims):
        bound = 1.0 / jnp.sqrt(fan_in)
        w = jax.random.uniform(keys[2 * i], (fan_in, fan_out),
                               minval=-bound, maxval=bound, dtype=jnp.float32)
        b = jax.random.uniform(keys[2 * i + 1], (1, fan_out),
                               minval=-bound, maxval=bound, dtype=jnp.float32)
        params[f"w{i + 1}"] = w
        params[f"b{i + 1}"] = b
    return params


def reference_forward(x_nchw, params):
    x = x_nchw.reshape(x_nchw.shape[0], IN_DIM)
    h = jnp.maximum(x @ params["w1"] + params["b1"], 0.0)
    h = jax.nn.sigmoid(h @ params["w2"] + params["b2"])
    h = jnp.maximum(h @ params["w3"] + params["b3"], 0.0)
    return h @ params["w4"] + params["b4"]


if __name__ == "__main__":
    key = jax.random.PRNGKey(0)
    k_x, k_p = jax.random.split(key)

    B = 8
    x = jax.random.normal(k_x, (B, 1, 28, 28), dtype=jnp.float32)
    params = init_params(k_p)

    out = neural_network_forward(x, params)
    out = jax.block_until_ready(out)

    ref = reference_forward(x, params)
    assert out.shape == (B, OUT)
    # bf16 MXU inputs + bf16 output store + approx reciprocal -> relaxed tol.
    # TODO(synk): drop approx=True / bf16 if these logits feed a gradient path.
    assert jnp.allclose(out, ref, atol=5e-2, rtol=5e-2), \
        f"max abs err {jnp.max(jnp.abs(out - ref))}"

    print("KERNEL_OK")
</pallas_src>

<mosaic_0001>
module attributes {stable_mosaic.version = 11 : i64} {
  func.func @mlp_kernel(%arg0: i32, %arg1: memref<16x784xf32, #tpu.memory_space<vmem>>, %arg2: memref<784x128xbf16, #tpu.memory_space<vmem>>, %arg3: memref<1x128xf32, #tpu.memory_space<vmem>>, %arg4: memref<128x128xbf16, #tpu.memory_space<vmem>>, %arg5: memref<1x128xf32, #tpu.memory_space<vmem>>, %arg6: memref<128x128xbf16, #tpu.memory_space<vmem>>, %arg7: memref<1x128xf32, #tpu.memory_space<vmem>>, %arg8: memref<128x128xbf16, #tpu.memory_space<vmem>>, %arg9: memref<1x128xf32, #tpu.memory_space<vmem>>, %arg10: memref<16x128xbf16, #tpu.memory_space<vmem>>) attributes {dimension_semantics = [#tpu.dimension_semantics<parallel>], iteration_bounds = array<i64: 1>, scalar_prefetch = 0 : i64, scratch_operands = 0 : i64, tpu.core_type = #tpu.core_type<tc>, window_params = [{transform_indices = @transform_0, window_bounds = array<i64: 16, 784>}, {pipeline_mode = #tpu.pipeline_mode<synchronous>, transform_indices = @transform_1, window_bounds = array<i64: 784, 128>}, {pipeline_mode = #tpu.pipeline_mode<synchronous>, transform_indices = @transform_2, window_bounds = array<i64: 1, 128>}, {pipeline_mode = #tpu.pipeline_mode<synchronous>, transform_indices = @transform_3, window_bounds = array<i64: 128, 128>}, {pipeline_mode = #tpu.pipeline_mode<synchronous>, transform_indices = @transform_4, window_bounds = array<i64: 1, 128>}, {pipeline_mode = #tpu.pipeline_mode<synchronous>, transform_indices = @transform_5, window_bounds = array<i64: 128, 128>}, {pipeline_mode = #tpu.pipeline_mode<synchronous>, transform_indices = @transform_6, window_bounds = array<i64: 1, 128>}, {pipeline_mode = #tpu.pipeline_mode<synchronous>, transform_indices = @transform_7, window_bounds = array<i64: 128, 128>}, {pipeline_mode = #tpu.pipeline_mode<synchronous>, transform_indices = @transform_8, window_bounds = array<i64: 1, 128>}, {transform_indices = @transform_9, window_bounds = array<i64: 16, 128>}]} {
    %c0 = arith.constant 0 : index
    %c0_0 = arith.constant 0 : index
    %0 = vector.load %arg1[%c0, %c0_0] : memref<16x784xf32, #tpu.memory_space<vmem>>, vector<16x784xf32>
    %1 = arith.truncf %0 : vector<16x784xf32> to vector<16x784xbf16>
    %c0_1 = arith.constant 0 : index
    %c0_2 = arith.constant 0 : index
    %2 = vector.load %arg2[%c0_1, %c0_2] : memref<784x128xbf16, #tpu.memory_space<vmem>>, vector<784x128xbf16>
    %cst = arith.constant dense<0.000000e+00> : vector<16x128xf32>
    %3 = tpu.matmul %1, %2, %cst {dimension_numbers = #tpu.dot_dimension_numbers<[1], [0], [0], [1], [0, 0, 1, 1], [], []>} : vector<16x784xbf16>, vector<784x128xbf16>, vector<16x128xf32> -> vector<16x128xf32>
    %c0_3 = arith.constant 0 : index
    %c0_4 = arith.constant 0 : index
    %4 = vector.load %arg3[%c0_3, %c0_4] : memref<1x128xf32, #tpu.memory_space<vmem>>, vector<1x128xf32>
    %5 = vector.broadcast %4 : vector<1x128xf32> to vector<16x128xf32>
    %6 = arith.addf %3, %5 : vector<16x128xf32>
    %cst_5 = arith.constant 0.000000e+00 : f32
    %7 = vector.broadcast %cst_5 : f32 to vector<16x128xf32>
    %8 = arith.maximumf %6, %7 : vector<16x128xf32>
    %9 = arith.truncf %8 : vector<16x128xf32> to vector<16x128xbf16>
    %c0_6 = arith.constant 0 : index
    %c0_7 = arith.constant 0 : index
    %10 = vector.load %arg4[%c0_6, %c0_7] : memref<128x128xbf16, #tpu.memory_space<vmem>>, vector<128x128xbf16>
    %cst_8 = arith.constant dense<0.000000e+00> : vector<16x128xf32>
    %11 = tpu.matmul %9, %10, %cst_8 {dimension_numbers = #tpu.dot_dimension_numbers<[1], [0], [0], [1], [0, 0, 1, 1], [], []>} : vector<16x128xbf16>, vector<128x128xbf16>, vector<16x128xf32> -> vector<16x128xf32>
    %c0_9 = arith.constant 0 : index
    %c0_10 = arith.constant 0 : index
    %12 = vector.load %arg5[%c0_9, %c0_10] : memref<1x128xf32, #tpu.memory_space<vmem>>, vector<1x128xf32>
    %13 = vector.broadcast %12 : vector<1x128xf32> to vector<16x128xf32>
    %14 = arith.addf %11, %13 : vector<16x128xf32>
    %cst_11 = arith.constant 0.000000e+00 : f32
    %15 = vector.broadcast %cst_11 : f32 to vector<16x128xf32>
    %16 = arith.subf %15, %14 : vector<16x128xf32>
    %17 = math.exp %16 : vector<16x128xf32>
    %cst_12 = arith.constant 1.000000e+00 : f32
    %18 = vector.broadcast %cst_12 : f32 to vector<16x128xf32>
    %19 = arith.addf %18, %17 : vector<16x128xf32>
    %20 = tpu.reciprocal %19 {approx = true} : vector<16x128xf32> -> vector<16x128xf32>
    %21 = arith.truncf %20 : vector<16x128xf32> to vector<16x128xbf16>
    %c0_13 = arith.constant 0 : index
    %c0_14 = arith.constant 0 : index
    %22 = vector.load %arg6[%c0_13, %c0_14] : memref<128x128xbf16, #tpu.memory_space<vmem>>, vector<128x128xbf16>
    %cst_15 = arith.constant dense<0.000000e+00> : vector<16x128xf32>
    %23 = tpu.matmul %21, %22, %cst_15 {dimension_numbers = #tpu.dot_dimension_numbers<[1], [0], [0], [1], [0, 0, 1, 1], [], []>} : vector<16x128xbf16>, vector<128x128xbf16>, vector<16x128xf32> -> vector<16x128xf32>
    %c0_16 = arith.constant 0 : index
    %c0_17 = arith.constant 0 : index
    %24 = vector.load %arg7[%c0_16, %c0_17] : memref<1x128xf32, #tpu.memory_space<vmem>>, vector<1x128xf32>
    %25 = vector.broadcast %24 : vector<1x128xf32> to vector<16x128xf32>
    %26 = arith.addf %23, %25 : vector<16x128xf32>
    %cst_18 = arith.constant 0.000000e+00 : f32
    %27 = vector.broadcast %cst_18 : f32 to vector<16x128xf32>
    %28 = arith.maximumf %26, %27 : vector<16x128xf32>
    %29 = arith.truncf %28 : vector<16x128xf32> to vector<16x128xbf16>
    %c0_19 = arith.constant 0 : index
    %c0_20 = arith.constant 0 : index
    %30 = vector.load %arg8[%c0_19, %c0_20] : memref<128x128xbf16, #tpu.memory_space<vmem>>, vector<128x128xbf16>
    %cst_21 = arith.constant dense<0.000000e+00> : vector<16x128xf32>
    %31 = tpu.matmul %29, %30, %cst_21 {dimension_numbers = #tpu.dot_dimension_numbers<[1], [0], [0], [1], [0, 0, 1, 1], [], []>} : vector<16x128xbf16>, vector<128x128xbf16>, vector<16x128xf32> -> vector<16x128xf32>
    %c0_22 = arith.constant 0 : index
    %c0_23 = arith.constant 0 : index
    %32 = vector.load %arg9[%c0_22, %c0_23] : memref<1x128xf32, #tpu.memory_space<vmem>>, vector<1x128xf32>
    %33 = vector.broadcast %32 : vector<1x128xf32> to vector<16x128xf32>
    %34 = arith.addf %31, %33 : vector<16x128xf32>
    %35 = arith.truncf %34 : vector<16x128xf32> to vector<16x128xbf16>
    %c0_24 = arith.constant 0 : index
    %c0_25 = arith.constant 0 : index
    %36 = vector.load %arg10[%c0_24, %c0_25] : memref<16x128xbf16, #tpu.memory_space<vmem>>, vector<16x128xbf16>
    tpu.vector_store %arg10[%c0_24, %c0_25], %35 {strides = array<i32>} : memref<16x128xbf16, #tpu.memory_space<vmem>>, vector<16x128xbf16>,
    return
  }
  func.func @transform_0(%arg0: i32) -> (i32, i32) {
    %c0_i32 = arith.constant 0 : i32
    %c0_i32_0 = arith.constant 0 : i32
    return %arg0, %c0_i32 : i32, i32
  }
  func.func @transform_1(%arg0: i32) -> (i32, i32) {
    %c0_i32 = arith.constant 0 : i32
    %c0_i32_0 = arith.constant 0 : i32
    %c0_i32_1 = arith.constant 0 : i32
    return %c0_i32, %c0_i32_0 : i32, i32
  }
  func.func @transform_2(%arg0: i32) -> (i32, i32) {
    %c0_i32 = arith.constant 0 : i32
    %c0_i32_0 = arith.constant 0 : i32
    %c0_i32_1 = arith.constant 0 : i32
    return %c0_i32, %c0_i32_0 : i32, i32
  }
  func.func @transform_3(%arg0: i32) -> (i32, i32) {
    %c0_i32 = arith.constant 0 : i32
    %c0_i32_0 = arith.constant 0 : i32
    %c0_i32_1 = arith.constant 0 : i32
    return %c0_i32, %c0_i32_0 : i32, i32
  }
  func.func @transform_4(%arg0: i32) -> (i32, i32) {
    %c0_i32 = arith.constant 0 : i32
    %c0_i32_0 = arith.constant 0 : i32
    %c0_i32_1 = arith.constant 0 : i32
    return %c0_i32, %c0_i32_0 : i32, i32
  }
  func.func @transform_5(%arg0: i32) -> (i32, i32) {
    %c0_i32 = arith.constant 0 : i32
    %c0_i32_0 = arith.constant 0 : i32
    %c0_i32_1 = arith.constant 0 : i32
    return %c0_i32, %c0_i32_0 : i32, i32
  }
  func.func @transform_6(%arg0: i32) -> (i32, i32) {
    %c0_i32 = arith.constant 0 : i32
    %c0_i32_0 = arith.constant 0 : i32
    %c0_i32_1 = arith.constant 0 : i32
    return %c0_i32, %c0_i32_0 : i32, i32
  }
  func.func @transform_7(%arg0: i32) -> (i32, i32) {
    %c0_i32 = arith.constant 0 : i32
    %c0_i32_0 = arith.constant 0 : i32
    %c0_i32_1 = arith.constant 0 : i32
    return %c0_i32, %c0_i32_0 : i32, i32
  }
  func.func @transform_8(%arg0: i32) -> (i32, i32) {
    %c0_i32 = arith.constant 0 : i32
    %c0_i32_0 = arith.constant 0 : i32
    %c0_i32_1 = arith.constant 0 : i32
    return %c0_i32, %c0_i32_0 : i32, i32
  }
  func.func @transform_9(%arg0: i32) -> (i32, i32) {
    %c0_i32 = arith.constant 0 : i32
    %c0_i32_0 = arith.constant 0 : i32
    return %arg0, %c0_i32 : i32, i32
  }
}

</mosaic_0001>

<llo_original>
// kernel: tpu_custom_call.1
$region0: #{tpu_custom_call.1}
  #allocation0 [shape = 'u32[]', space=smem, size = 0x4, offset = 0x4, fixed_abs, tag = 'smem constant byte address 0x4 - core index']
  #allocation1 [shape = 'u32[72,128]{1,0:T(1,128)}', space=vmem, size = 0x9000, scoped, tag = 'internal scratch']
  %s0 = inlined_call_operand.hbm [shape: f32[8,784], index: 0, kind: input, shape index: {}]
  %s1 = inlined_call_operand.hbm [shape: bf16[784,128], index: 1, kind: input, shape index: {}]
  %s2 = inlined_call_operand.vmem [shape: f32[1,128], index: 2, kind: input, shape index: {}]
  %s3 = inlined_call_operand.hbm [shape: bf16[128,128], index: 3, kind: input, shape index: {}]
  %s4 = inlined_call_operand.vmem [shape: f32[1,128], index: 4, kind: input, shape index: {}]
  %s5 = inlined_call_operand.hbm [shape: bf16[128,128], index: 5, kind: input, shape index: {}]
  %s6 = inlined_call_operand.vmem [shape: f32[1,128], index: 6, kind: input, shape index: {}]
  %s7 = inlined_call_operand.hbm [shape: bf16[128,128], index: 7, kind: input, shape index: {}]
  %s8 = inlined_call_operand.vmem [shape: f32[1,128], index: 8, kind: input, shape index: {}]
  %s9 = inlined_call_operand.hbm [shape: bf16[8,128], index: 9, kind: output, shape index: {}]
  %s10 = sld [smem:[#allocation0]]
  $region66: #{tpu_custom_call.1} parent=0
    _
  %s12 = ssub.s32 1, %s10
  %s13 = scalar_select 0, %s12, %s10
  $region1: #{tpu_custom_call.1} parent=0
    #allocation2 [shape = 'u8[57344]{0}', space=vmem, size = 0xe000, scoped, tag = 'input window, operand 0, single buffered']
    #allocation3 [shape = 's32[1]{0}', space=sflag, size = 0x4, scoped, tag = 'scoped memory for tpu_custom_call.1']
    #allocation4 [shape = 's32[1]{0}', space=sflag, size = 0x4, scoped, tag = 'scoped memory for tpu_custom_call.1']
    #allocation5 [shape = 'u8[200704]{0}', space=vmem, size = 0x31000, scoped, tag = 'input window, operand 1, single buffered']
    #allocation6 [shape = 's32[1]{0}', space=sflag, size = 0x4, scoped, tag = 'scoped memory for tpu_custom_call.1']
    #allocation7 [shape = 'u8[32768]{0}', space=vmem, size = 0x8000, scoped, tag = 'input window, operand 3, single buffered']
    #allocation8 [shape = 'u8[32768]{0}', space=vmem, size = 0x8000, scoped, tag = 'input window, operand 5, single buffered']
    #allocation9 [shape = 's32[1]{0}', space=sflag, size = 0x4, scoped, tag = 'scoped memory for tpu_custom_call.1']
    #allocation10 [shape = 'u8[32768]{0}', space=vmem, size = 0x8000, scoped, tag = 'input window, operand 7, single buffered']
    #allocation11 [shape = 'u8[4096]{0}', space=vmem, size = 0x1000, scoped, tag = 'output window, operand 0, single buffered']
    %14 = vsyncpa [#allocation3], 0
    %15 = vsyncpa [#allocation6], 0
    %16 = vsyncpa [#allocation9], 0
    %17 = vsyncpa [#allocation4], 0
    // Predicated region
    $region2: #{tpu_custom_call.1} parent=1 // pred_check
      _
    $region3: #{tpu_custom_call.1} parent=1 // pred_check_branch
      %19 = sbr.rel (0) target = $region5
    $region4: #{tpu_custom_call.1} parent=1 // pred_region
      %21 = vsyncadd [#allocation3], 896
      %s22 = sshll.u32 %s0, 4
      %s23 = int_to_ptr.hbm [resolvable:$true] %s22
      %s24 = sshll.u32 [#allocation2], 4
      %s25 = int_to_ptr.vmem [resolvable:$true] %s24
      %30 = dma.hbm_to_vmem [thread:$0]  %s23, 896, %s25, [#allocation3], 896, 896, 56
    $region5: #{tpu_custom_call.1} parent=1 // pred_fallthru
      _
    // Predicated region
    $region6: #{tpu_custom_call.1} parent=1 // pred_check
      _
    $region7: #{tpu_custom_call.1} parent=1 // pred_check_branch
      %32 = sbr.rel (0) target = $region9
    $region8: #{tpu_custom_call.1} parent=1 // pred_region
      %34 = vsyncadd [#allocation6], 0
      %s35 = sshll.u32 %s1, 4
      %s36 = int_to_ptr.hbm [resolvable:$true] %s35
      %s37 = sshll.u32 [#allocation5], 4
      %s38 = int_to_ptr.vmem [resolvable:$true] %s37
      %43 = dma.hbm_to_vmem [thread:$0]  %s36, 6272, %s38, [#allocation6], 64, 64, 4
    $region9: #{tpu_custom_call.1} parent=1 // pred_fallthru
      _
    // Predicated region
    $region10: #{tpu_custom_call.1} parent=1 // pred_check
      _
    $region11: #{tpu_custom_call.1} parent=1 // pred_check_branch
      %45 = sbr.rel (0) target = $region13
    $region12: #{tpu_custom_call.1} parent=1 // pred_region
      _
    $region13: #{tpu_custom_call.1} parent=1 // pred_fallthru
      _
    // Predicated region
    $region14: #{tpu_custom_call.1} parent=1 // pred_check
      _
    $region15: #{tpu_custom_call.1} parent=1 // pred_check_branch
      %47 = sbr.rel (0) target = $region17
    $region16: #{tpu_custom_call.1} parent=1 // pred_region
      %49 = vsyncadd [#allocation6], 0
      %s50 = sshll.u32 %s3, 4
      %s51 = int_to_ptr.hbm [resolvable:$true] %s50
      %s52 = sshll.u32 [#allocation7], 4
      %s53 = int_to_ptr.vmem [resolvable:$true] %s52
      %58 = dma.hbm_to_vmem [thread:$0]  %s51, 1024, %s53, [#allocation6], 64, 64, 4
    $region17: #{tpu_custom_call.1} parent=1 // pred_fallthru
      _
    // Predicated region
    $region18: #{tpu_custom_call.1} parent=1 // pred_check
      _
    $region19: #{tpu_custom_call.1} parent=1 // pred_check_branch
      %60 = sbr.rel (0) target = $region21
    $region20: #{tpu_custom_call.1} parent=1 // pred_region
      _
    $region21: #{tpu_custom_call.1} parent=1 // pred_fallthru
      _
    // Predicated region
    $region22: #{tpu_custom_call.1} parent=1 // pred_check
      _
    $region23: #{tpu_custom_call.1} parent=1 // pred_check_branch
      %62 = sbr.rel (0) target = $region25
    $region24: #{tpu_custom_call.1} parent=1 // pred_region
      %64 = vsyncadd [#allocation9], 0
      %s65 = sshll.u32 %s5, 4
      %s66 = int_to_ptr.hbm [resolvable:$true] %s65
      %s67 = sshll.u32 [#allocation8], 4
      %s68 = int_to_ptr.vmem [resolvable:$true] %s67
      %73 = dma.hbm_to_vmem [thread:$0]  %s66, 1024, %s68, [#allocation9], 64, 64, 4
    $region25: #{tpu_custom_call.1} parent=1 // pred_fallthru
      _
    // Predicated region
    $region26: #{tpu_custom_call.1} parent=1 // pred_check
      _
    $region27: #{tpu_custom_call.1} parent=1 // pred_check_branch
      %75 = sbr.rel (0) target = $region29
    $region28: #{tpu_custom_call.1} parent=1 // pred_region
      _
    $region29: #{tpu_custom_call.1} parent=1 // pred_fallthru
      _
    // Predicated region
    $region30: #{tpu_custom_call.1} parent=1 // pred_check
      _
    $region31: #{tpu_custom_call.1} parent=1 // pred_check_branch
      %77 = sbr.rel (0) target = $region33
    $region32: #{tpu_custom_call.1} parent=1 // pred_region
      %79 = vsyncadd [#allocation9], 0
      %s80 = sshll.u32 %s7, 4
      %s81 = int_to_ptr.hbm [resolvable:$true] %s80
      %s82 = sshll.u32 [#allocation10], 4
      %s83 = int_to_ptr.vmem [resolvable:$true] %s82
      %88 = dma.hbm_to_vmem [thread:$0]  %s81, 1024, %s83, [#allocation9], 64, 64, 4
    $region33: #{tpu_custom_call.1} parent=1 // pred_fallthru
      _
    // Predicated region
    $region34: #{tpu_custom_call.1} parent=1 // pred_check
      _
    $region35: #{tpu_custom_call.1} parent=1 // pred_check_branch
      %90 = sbr.rel (0) target = $region37
    $region36: #{tpu_custom_call.1} parent=1 // pred_region
      _
    $region37: #{tpu_custom_call.1} parent=1 // pred_fallthru
      _
    // Predicated region
    $region38: #{tpu_custom_call.1} parent=1 // pred_check
      _
    $region39: #{tpu_custom_call.1} parent=1 // pred_check_branch
      %92 = sbr.rel (0) target = $region41
    $region40: #{tpu_custom_call.1} parent=1 // pred_region
      %94 = dma.done [#allocation3], 1792
    $region41: #{tpu_custom_call.1} parent=1 // pred_fallthru
      _
    // Predicated region
    $region42: #{tpu_custom_call.1} parent=1 // pred_check
      _
    $region43: #{tpu_custom_call.1} parent=1 // pred_check_branch
      %96 = sbr.rel (0) target = $region45
    $region44: #{tpu_custom_call.1} parent=1 // pred_region
      %98 = dma.done [#allocation6], 6272
    $region45: #{tpu_custom_call.1} parent=1 // pred_fallthru
      _
    // Predicated region
    $region46: #{tpu_custom_call.1} parent=1 // pred_check
      _
    $region47: #{tpu_custom_call.1} parent=1 // pred_check_branch
      %100 = sbr.rel (0) target = $region49
    $region48: #{tpu_custom_call.1} parent=1 // pred_region
      %102 = dma.done [#allocation6], 1024
    $region49: #{tpu_custom_call.1} parent=1 // pred_fallthru
      _
    // Predicated region
    $region50: #{tpu_custom_call.1} parent=1 // pred_check
      _
    $region51: #{tpu_custom_call.1} parent=1 // pred_check_branch
      %104 = sbr.rel (0) target = $region53
    $region52: #{tpu_custom_call.1} parent=1 // pred_region
      %106 = dma.done [#allocation9], 1024
    $region53: #{tpu_custom_call.1} parent=1 // pred_fallthru
      _
    // Predicated region
    $region54: #{tpu_custom_call.1} parent=1 // pred_check
      _
    $region55: #{tpu_custom_call.1} parent=1 // pred_check_branch
      %108 = sbr.rel (0) target = $region57
    $region56: #{tpu_custom_call.1} parent=1 // pred_region
      %110 = dma.done [#allocation9], 1024
    $region57: #{tpu_custom_call.1} parent=1 // pred_fallthru
      _
    %v112 = vld [vmem:[#allocation2] sm:$0xff]
    %v113 = vld [vmem:[#allocation2 + $0x8] sm:$0xff]
    %v114 = vld [vmem:[#allocation2 + $0x10] sm:$0xff]
    %v115 = vld [vmem:[#allocation2 + $0x18] sm:$0xff]
    %v116 = vld [vmem:[#allocation2 + $0x20] sm:$0xff]
    %v117 = vld [vmem:[#allocation2 + $0x28] sm:$0xff]
    %v118 = vld [vmem:[#allocation2 + $0x30] sm:$0xff]
    %v119 = vld [vmem:[#allocation2 + $0x38] sm:$0xff]
    %v120 = vld [vmem:[#allocation2 + $0x40] sm:$0xff]
    %v121 = vld [vmem:[#allocation2 + $0x48] sm:$0xff]
    %v122 = vld [vmem:[#allocation2 + $0x50] sm:$0xff]
    %v123 = vld [vmem:[#allocation2 + $0x58] sm:$0xff]
    %v124 = vld [vmem:[#allocation2 + $0x60] sm:$0xff]
    %v125 = vld [vmem:[#allocation2 + $0x68] sm:$0xff]
    %v126 = vpack.c.bf16 %v119, %v112
    %v127 = vpack.c.bf16 %v120, %v113
    %v128 = vpack.c.bf16 %v121, %v114
    %v129 = vpack.c.bf16 %v122, %v115
    %v130 = vpack.c.bf16 %v123, %v116
    %v131 = vpack.c.bf16 %v124, %v117
    %v132 = vpack.c.bf16 %v125, %v118
    %v133 = vld [vmem:[#allocation5] sm:$0xf]
    %v134 = vld [vmem:[#allocation5 + $0x4] sm:$0xf]
    %v135 = vld [vmem:[#allocation5 + $0x8] sm:$0xf]
    %v136 = vld [vmem:[#allocation5 + $0xc] sm:$0xf]
    %v137 = vld [vmem:[#allocation5 + $0x10] sm:$0xf]
    %v138 = vld [vmem:[#allocation5 + $0x14] sm:$0xf]
    %v139 = vld [vmem:[#allocation5 + $0x18] sm:$0xf]
    %v140 = vld [vmem:[#allocation5 + $0x1c] sm:$0xf]
    %v141 = vld [vmem:[#allocation5 + $0x20] sm:$0xf]
    %v142 = vld [vmem:[#allocation5 + $0x24] sm:$0xf]
    %v143 = vld [vmem:[#allocation5 + $0x28] sm:$0xf]
    %v144 = vld [vmem:[#allocation5 + $0x2c] sm:$0xf]
    %v145 = vld [vmem:[#allocation5 + $0x30] sm:$0xf]
    %v146 = vld [vmem:[#allocation5 + $0x34] sm:$0xf]
    %v147 = vld [vmem:[#allocation5 + $0x38] sm:$0xf]
    %v148 = vld [vmem:[#allocation5 + $0x3c] sm:$0xf]
    %v149 = vld [vmem:[#allocation5 + $0x40] sm:$0xf]
    %v150 = vld [vmem:[#allocation5 + $0x44] sm:$0xf]
    %v151 = vld [vmem:[#allocation5 + $0x48] sm:$0xf]
    %v152 = vld [vmem:[#allocation5 + $0x4c] sm:$0xf]
    %v153 = vld [vmem:[#allocation5 + $0x50] sm:$0xf]
    %v154 = vld [vmem:[#allocation5 + $0x54] sm:$0xf]
    %v155 = vld [vmem:[#allocation5 + $0x58] sm:$0xf]
    %v156 = vld [vmem:[#allocation5 + $0x5c] sm:$0xf]
    %v157 = vld [vmem:[#allocation5 + $0x60] sm:$0xf]
    %v158 = vld [vmem:[#allocation5 + $0x64] sm:$0xf]
    %v159 = vld [vmem:[#allocation5 + $0x68] sm:$0xf]
    %v160 = vld [vmem:[#allocation5 + $0x6c] sm:$0xf]
    %v161 = vld [vmem:[#allocation5 + $0x70] sm:$0xf]
    %v162 = vld [vmem:[#allocation5 + $0x74] sm:$0xf]
    %v163 = vld [vmem:[#allocation5 + $0x78] sm:$0xf]
    %v164 = vld [vmem:[#allocation5 + $0x7c] sm:$0xf]
    %v165 = vld [vmem:[#allocation5 + $0x80] sm:$0xf]
    %v166 = vld [vmem:[#allocation5 + $0x84] sm:$0xf]
    %v167 = vld [vmem:[#allocation5 + $0x88] sm:$0xf]
    %v168 = vld [vmem:[#allocation5 + $0x8c] sm:$0xf]
    %v169 = vld [vmem:[#allocation5 + $0x90] sm:$0xf]
    %v170 = vld [vmem:[#allocation5 + $0x94] sm:$0xf]
    %v171 = vld [vmem:[#allocation5 + $0x98] sm:$0xf]
    %v172 = vld [vmem:[#allocation5 + $0x9c] sm:$0xf]
    %v173 = vld [vmem:[#allocation5 + $0xa0] sm:$0xf]
    %v174 = vld [vmem:[#allocation5 + $0xa4] sm:$0xf]
    %v175 = vld [vmem:[#allocation5 + $0xa8] sm:$0xf]
    %v176 = vld [vmem:[#allocation5 + $0xac] sm:$0xf]
    %v177 = vld [vmem:[#allocation5 + $0xb0] sm:$0xf]
    %v178 = vld [vmem:[#allocation5 + $0xb4] sm:$0xf]
    %v179 = vld [vmem:[#allocation5 + $0xb8] sm:$0xf]
    %v180 = vld [vmem:[#allocation5 + $0xbc] sm:$0xf]
    %v181 = vld [vmem:[#allocation5 + $0xc0] sm:$0xf]
    %v182 = vld [vmem:[#allocation5 + $0xc4] sm:$0xf]
    %v183 = vld [vmem:[#allocation5 + $0xc8] sm:$0xf]
    %v184 = vld [vmem:[#allocation5 + $0xcc] sm:$0xf]
    %v185 = vld [vmem:[#allocation5 + $0xd0] sm:$0xf]
    %v186 = vld [vmem:[#allocation5 + $0xd4] sm:$0xf]
    %v187 = vld [vmem:[#allocation5 + $0xd8] sm:$0xf]
    %v188 = vld [vmem:[#allocation5 + $0xdc] sm:$0xf]
    %v189 = vld [vmem:[#allocation5 + $0xe0] sm:$0xf]
    %v190 = vld [vmem:[#allocation5 + $0xe4] sm:$0xf]
    %v191 = vld [vmem:[#allocation5 + $0xe8] sm:$0xf]
    %v192 = vld [vmem:[#allocation5 + $0xec] sm:$0xf]
    %v193 = vld [vmem:[#allocation5 + $0xf0] sm:$0xf]
    %v194 = vld [vmem:[#allocation5 + $0xf4] sm:$0xf]
    %v195 = vld [vmem:[#allocation5 + $0xf8] sm:$0xf]
    %v196 = vld [vmem:[#allocation5 + $0xfc] sm:$0xf]
    %v197 = vld [vmem:[#allocation5 + $0x100] sm:$0xf]
    %v198 = vld [vmem:[#allocation5 + $0x104] sm:$0xf]
    %v199 = vld [vmem:[#allocation5 + $0x108] sm:$0xf]
    %v200 = vld [vmem:[#allocation5 + $0x10c] sm:$0xf]
    %v201 = vld [vmem:[#allocation5 + $0x110] sm:$0xf]
    %v202 = vld [vmem:[#allocation5 + $0x114] sm:$0xf]
    %v203 = vld [vmem:[#allocation5 + $0x118] sm:$0xf]
    %v204 = vld [vmem:[#allocation5 + $0x11c] sm:$0xf]
    %v205 = vld [vmem:[#allocation5 + $0x120] sm:$0xf]
    %v206 = vld [vmem:[#allocation5 + $0x124] sm:$0xf]
    %v207 = vld [vmem:[#allocation5 + $0x128] sm:$0xf]
    %v208 = vld [vmem:[#allocation5 + $0x12c] sm:$0xf]
    %v209 = vld [vmem:[#allocation5 + $0x130] sm:$0xf]
    %v210 = vld [vmem:[#allocation5 + $0x134] sm:$0xf]
    %v211 = vld [vmem:[#allocation5 + $0x138] sm:$0xf]
    %v212 = vld [vmem:[#allocation5 + $0x13c] sm:$0xf]
    %v213 = vld [vmem:[#allocation5 + $0x140] sm:$0xf]
    %v214 = vld [vmem:[#allocation5 + $0x144] sm:$0xf]
    %v215 = vld [vmem:[#allocation5 + $0x148] sm:$0xf]
    %v216 = vld [vmem:[#allocation5 + $0x14c] sm:$0xf]
    %v217 = vld [vmem:[#allocation5 + $0x150] sm:$0xf]
    %v218 = vld [vmem:[#allocation5 + $0x154] sm:$0xf]
    %v219 = vld [vmem:[#allocation5 + $0x158] sm:$0xf]
    %v220 = vld [vmem:[#allocation5 + $0x15c] sm:$0xf]
    %v221 = vld [vmem:[#allocation5 + $0x160] sm:$0xf]
    %v222 = vld [vmem:[#allocation5 + $0x164] sm:$0xf]
    %v223 = vld [vmem:[#allocation5 + $0x168] sm:$0xf]
    %v224 = vld [vmem:[#allocation5 + $0x16c] sm:$0xf]
    %v225 = vld [vmem:[#allocation5 + $0x170] sm:$0xf]
    %v226 = vld [vmem:[#allocation5 + $0x174] sm:$0xf]
    %v227 = vld [vmem:[#allocation5 + $0x178] sm:$0xf]
    %v228 = vld [vmem:[#allocation5 + $0x17c] sm:$0xf]
    %v229 = vld [vmem:[#allocation5 + $0x180] sm:$0xf]
    %v230 = vld [vmem:[#allocation5 + $0x184] sm:$0xf]
    %v231 = vld [vmem:[%s2] sm:$0x1]
    %v233 = vperm.slane %v231, 0
    %v333 = vunpack.c.l.b16 %v133
    %v334 = vunpack.c.l.b16 %v134
    %v335 = vunpack.c.l.b16 %v135
    %v336 = vunpack.c.l.b16 %v136
    %v337 = vunpack.c.l.b16 %v137
    %v338 = vunpack.c.l.b16 %v138
    %v339 = vunpack.c.l.b16 %v139
    %v340 = vunpack.c.l.b16 %v140
    %v341 = vunpack.c.l.b16 %v141
    %v342 = vunpack.c.l.b16 %v142
    %v343 = vunpack.c.l.b16 %v143
    %v344 = vunpack.c.l.b16 %v144
    %v345 = vunpack.c.l.b16 %v145
    %v346 = vunpack.c.l.b16 %v146
    %v347 = vunpack.c.l.b16 %v147
    %v348 = vunpack.c.l.b16 %v148
    %v349 = vunpack.c.l.b16 %v149
    %v350 = vunpack.c.l.b16 %v150
    %v351 = vunpack.c.l.b16 %v151
    %v352 = vunpack.c.l.b16 %v152
    %v353 = vunpack.c.l.b16 %v153
    %v354 = vunpack.c.l.b16 %v154
    %v355 = vunpack.c.l.b16 %v155
    %v356 = vunpack.c.l.b16 %v156
    %v357 = vunpack.c.l.b16 %v157
    %v358 = vunpack.c.l.b16 %v158
    %v359 = vunpack.c.l.b16 %v159
    %v360 = vunpack.c.l.b16 %v160
    %v361 = vunpack.c.l.b16 %v161
    %v362 = vunpack.c.l.b16 %v162
    %v363 = vunpack.c.l.b16 %v163
    %v364 = vunpack.c.l.b16 %v164
    %v365 = vunpack.c.l.b16 %v165
    %v366 = vunpack.c.l.b16 %v166
    %v367 = vunpack.c.l.b16 %v167
    %v368 = vunpack.c.l.b16 %v168
    %v369 = vunpack.c.l.b16 %v169
    %v370 = vunpack.c.l.b16 %v170
    %v371 = vunpack.c.l.b16 %v171
    %v372 = vunpack.c.l.b16 %v172
    %v373 = vunpack.c.l.b16 %v173
    %v374 = vunpack.c.l.b16 %v174
    %v375 = vunpack.c.l.b16 %v175
    %v376 = vunpack.c.l.b16 %v176
    %v377 = vunpack.c.l.b16 %v177
    %v378 = vunpack.c.l.b16 %v178
    %v379 = vunpack.c.l.b16 %v179
    %v380 = vunpack.c.l.b16 %v180
    %v381 = vunpack.c.l.b16 %v181
    %v382 = vunpack.c.l.b16 %v182
    %v383 = vunpack.c.l.b16 %v183
    %v384 = vunpack.c.l.b16 %v184
    %v385 = vunpack.c.l.b16 %v185
    %v386 = vunpack.c.l.b16 %v186
    %v387 = vunpack.c.l.b16 %v187
    %v388 = vunpack.c.l.b16 %v188
    %v389 = vunpack.c.l.b16 %v189
    %v390 = vunpack.c.l.b16 %v190
    %v391 = vunpack.c.l.b16 %v191
    %v392 = vunpack.c.l.b16 %v192
    %v393 = vunpack.c.l.b16 %v193
    %v394 = vunpack.c.l.b16 %v194
    %v395 = vunpack.c.l.b16 %v195
    %v396 = vunpack.c.l.b16 %v196
    %v397 = vunpack.c.l.b16 %v197
    %v398 = vunpack.c.l.b16 %v198
    %v399 = vunpack.c.l.b16 %v199
    %v400 = vunpack.c.l.b16 %v200
    %v401 = vunpack.c.l.b16 %v201
    %v402 = vunpack.c.l.b16 %v202
    %v403 = vunpack.c.l.b16 %v203
    %v404 = vunpack.c.l.b16 %v204
    %v405 = vunpack.c.l.b16 %v205
    %v406 = vunpack.c.l.b16 %v206
    %v407 = vunpack.c.l.b16 %v207
    %v408 = vunpack.c.l.b16 %v208
    %v409 = vunpack.c.l.b16 %v209
    %v410 = vunpack.c.l.b16 %v210
    %v411 = vunpack.c.l.b16 %v211
    %v412 = vunpack.c.l.b16 %v212
    %v413 = vunpack.c.l.b16 %v213
    %v414 = vunpack.c.l.b16 %v214
    %v415 = vunpack.c.l.b16 %v215
    %v416 = vunpack.c.l.b16 %v216
    %v417 = vunpack.c.l.b16 %v217
    %v418 = vunpack.c.l.b16 %v218
    %v419 = vunpack.c.l.b16 %v219
    %v420 = vunpack.c.l.b16 %v220
    %v421 = vunpack.c.l.b16 %v221
    %v422 = vunpack.c.l.b16 %v222
    %v423 = vunpack.c.l.b16 %v223
    %v424 = vunpack.c.l.b16 %v224
    %v425 = vunpack.c.l.b16 %v225
    %v426 = vunpack.c.l.b16 %v226
    %v427 = vunpack.c.l.b16 %v227
    %v428 = vunpack.c.l.b16 %v228
    %v429 = vunpack.c.l.b16 %v229
    %v430 = vunpack.c.l.b16 %v230
    %v431 = vpack.c.b16 %v334, %v333
    %v432 = vpack.c.b16 %v336, %v335
    %v433 = vpack.c.b16 %v338, %v337
    %v434 = vpack.c.b16 %v340, %v339
    %v435 = vpack.c.b16 %v342, %v341
    %v436 = vpack.c.b16 %v344, %v343
    %v437 = vpack.c.b16 %v346, %v345
    %v438 = vpack.c.b16 %v348, %v347
    %v439 = vpack.c.b16 %v350, %v349
    %v440 = vpack.c.b16 %v352, %v351
    %v441 = vpack.c.b16 %v354, %v353
    %v442 = vpack.c.b16 %v356, %v355
    %v443 = vpack.c.b16 %v358, %v357
    %v444 = vpack.c.b16 %v360, %v359
    %v445 = vpack.c.b16 %v362, %v361
    %v446 = vpack.c.b16 %v364, %v363
    %v447 = vpack.c.b16 %v366, %v365
    %v448 = vpack.c.b16 %v368, %v367
    %v449 = vpack.c.b16 %v370, %v369
    %v450 = vpack.c.b16 %v372, %v371
    %v451 = vpack.c.b16 %v374, %v373
    %v452 = vpack.c.b16 %v376, %v375
    %v453 = vpack.c.b16 %v378, %v377
    %v454 = vpack.c.b16 %v380, %v379
    %v455 = vpack.c.b16 %v382, %v381
    %v456 = vpack.c.b16 %v384, %v383
    %v457 = vpack.c.b16 %v386, %v385
    %v458 = vpack.c.b16 %v388, %v387
    %v459 = vpack.c.b16 %v390, %v389
    %v460 = vpack.c.b16 %v392, %v391
    %v461 = vpack.c.b16 %v394, %v393
    %v462 = vpack.c.b16 %v396, %v395
    %v463 = vpack.c.b16 %v398, %v397
    %v464 = vpack.c.b16 %v400, %v399
    %v465 = vpack.c.b16 %v402, %v401
    %v466 = vpack.c.b16 %v404, %v403
    %v467 = vpack.c.b16 %v406, %v405
    %v468 = vpack.c.b16 %v408, %v407
    %v469 = vpack.c.b16 %v410, %v409
    %v470 = vpack.c.b16 %v412, %v411
    %v471 = vpack.c.b16 %v414, %v413
    %v472 = vpack.c.b16 %v416, %v415
    %v473 = vpack.c.b16 %v418, %v417
    %v474 = vpack.c.b16 %v420, %v419
    %v475 = vpack.c.b16 %v422, %v421
    %v476 = vpack.c.b16 %v424, %v423
    %v477 = vpack.c.b16 %v426, %v425
    %v478 = vpack.c.b16 %v428, %v427
    %v479 = vpack.c.b16 %v430, %v429
    %vm529 = vcmask 130048
    %v531 = vsel %vm529, %v132, 0
    %533 = vmatpush.bf16.msra.mxu0 %v438
    %534 = vmatpush.bf16.msra.mxu0 %v437
    %535 = vmatpush.bf16.msra.mxu0 %v436
    %536 = vmatpush.bf16.msra.mxu0 %v435
    %537 = vmatpush.bf16.msra.mxu0 %v434
    %538 = vmatpush.bf16.msra.mxu0 %v433
    %539 = vmatpush.bf16.msra.mxu0 %v432
    %540 = vmatpush.bf16.msra.mxu0 %v431
    %541 = vmatmul.bf16.gmra.mxu0 %v126
    %v542 = vpop.f32.mrf.mxu0
    %v543 = vadd.f32 %v233, %v542
    %v544 = vpop.f32.mrf.mxu0
    %v545 = vadd.f32 %v233, %v544
    %546 = vdwg.mxu0
    %547 = vmatpush.bf16.msra.mxu0 %v446
    %548 = vmatpush.bf16.msra.mxu0 %v445
    %549 = vmatpush.bf16.msra.mxu0 %v444
    %550 = vmatpush.bf16.msra.mxu0 %v443
    %551 = vmatpush.bf16.msra.mxu0 %v442
    %552 = vmatpush.bf16.msra.mxu0 %v441
    %553 = vmatpush.bf16.msra.mxu0 %v440
    %554 = vmatpush.bf16.msra.mxu0 %v439
    %555 = vmatmul.bf16.gmra.mxu0 %v127
    %v556 = vpop.f32.mrf.mxu0
    %v557 = vadd.f32 %v543, %v556
    %v558 = vpop.f32.mrf.mxu0
    %v559 = vadd.f32 %v545, %v558
    %560 = vdwg.mxu0
    %561 = vmatpush.bf16.msra.mxu0 %v454
    %562 = vmatpush.bf16.msra.mxu0 %v453
    %563 = vmatpush.bf16.msra.mxu0 %v452
    %564 = vmatpush.bf16.msra.mxu0 %v451
    %565 = vmatpush.bf16.msra.mxu0 %v450
    %566 = vmatpush.bf16.msra.mxu0 %v449
    %567 = vmatpush.bf16.msra.mxu0 %v448
    %568 = vmatpush.bf16.msra.mxu0 %v447
    %569 = vmatmul.bf16.gmra.mxu0 %v128
    %v570 = vpop.f32.mrf.mxu0
    %v571 = vadd.f32 %v557, %v570
    %v572 = vpop.f32.mrf.mxu0
    %v573 = vadd.f32 %v559, %v572
    %574 = vdwg.mxu0
    %575 = vmatpush.bf16.msra.mxu0 %v462
    %576 = vmatpush.bf16.msra.mxu0 %v461
    %577 = vmatpush.bf16.msra.mxu0 %v460
    %578 = vmatpush.bf16.msra.mxu0 %v459
    %579 = vmatpush.bf16.msra.mxu0 %v458
    %580 = vmatpush.bf16.msra.mxu0 %v457
    %581 = vmatpush.bf16.msra.mxu0 %v456
    %582 = vmatpush.bf16.msra.mxu0 %v455
    %583 = vmatmul.bf16.gmra.mxu0 %v129
    %v584 = vpop.f32.mrf.mxu0
    %v585 = vadd.f32 %v571, %v584
    %v586 = vpop.f32.mrf.mxu0
    %v587 = vadd.f32 %v573, %v586
    %588 = vdwg.mxu0
    %589 = vmatpush.bf16.msra.mxu0 %v470
    %590 = vmatpush.bf16.msra.mxu0 %v469
    %591 = vmatpush.bf16.msra.mxu0 %v468
    %592 = vmatpush.bf16.msra.mxu0 %v467
    %593 = vmatpush.bf16.msra.mxu0 %v466
    %594 = vmatpush.bf16.msra.mxu0 %v465
    %595 = vmatpush.bf16.msra.mxu0 %v464
    %596 = vmatpush.bf16.msra.mxu0 %v463
    %597 = vmatmul.bf16.gmra.mxu0 %v130
    %v598 = vpop.f32.mrf.mxu0
    %v599 = vadd.f32 %v585, %v598
    %v600 = vpop.f32.mrf.mxu0
    %v601 = vadd.f32 %v587, %v600
    %602 = vdwg.mxu0
    %603 = vmatpush.bf16.msra.mxu0 %v478
    %604 = vmatpush.bf16.msra.mxu0 %v477
    %605 = vmatpush.bf16.msra.mxu0 %v476
    %606 = vmatpush.bf16.msra.mxu0 %v475
    %607 = vmatpush.bf16.msra.mxu0 %v474
    %608 = vmatpush.bf16.msra.mxu0 %v473
    %609 = vmatpush.bf16.msra.mxu0 %v472
    %610 = vmatpush.bf16.msra.mxu0 %v471
    %611 = vmatmul.bf16.gmra.mxu0 %v131
    %v612 = vpop.f32.mrf.mxu0
    %v613 = vadd.f32 %v599, %v612
    %v614 = vpop.f32.mrf.mxu0
    %v615 = vadd.f32 %v601, %v614
    %616 = vdwg.mxu0
    %617 = vmatpush.bf16.msra.mxu0 0
    %618 = vmatpush.bf16.msra.mxu0 0
    %619 = vmatpush.bf16.msra.mxu0 0
    %620 = vmatpush.bf16.msra.mxu0 0
    %621 = vmatpush.bf16.msra.mxu0 0
    %622 = vmatpush.bf16.msra.mxu0 0
    %623 = vmatpush.bf16.msra.mxu0 0
    %624 = vmatpush.bf16.msra.mxu0 %v479
    %625 = vmatmul.bf16.gmra.mxu0 %v531
    %v626 = vpop.f32.mrf.mxu0
    %v627 = vadd.f32 %v613, %v626
    %v628 = vpop.f32.mrf.mxu0
    %v629 = vadd.f32 %v615, %v628
    %630 = vdwg.mxu0
    %v631 = vmax.f32 %v627, 0.0
    %v632 = vmax.f32 %v629, 0.0
    %v633 = vpack.c.bf16 %v632, %v631
    %v634 = vld [vmem:[#allocation7] sm:$0xf]
    %v635 = vld [vmem:[#allocation7 + $0x4] sm:$0xf]
    %v636 = vld [vmem:[#allocation7 + $0x8] sm:$0xf]
    %v637 = vld [vmem:[#allocation7 + $0xc] sm:$0xf]
    %v638 = vld [vmem:[#allocation7 + $0x10] sm:$0xf]
    %v639 = vld [vmem:[#allocation7 + $0x14] sm:$0xf]
    %v640 = vld [vmem:[#allocation7 + $0x18] sm:$0xf]
    %v641 = vld [vmem:[#allocation7 + $0x1c] sm:$0xf]
    %v642 = vld [vmem:[#allocation7 + $0x20] sm:$0xf]
    %v643 = vld [vmem:[#allocation7 + $0x24] sm:$0xf]
    %v644 = vld [vmem:[#allocation7 + $0x28] sm:$0xf]
    %v645 = vld [vmem:[#allocation7 + $0x2c] sm:$0xf]
    %v646 = vld [vmem:[#allocation7 + $0x30] sm:$0xf]
    %v647 = vld [vmem:[#allocation7 + $0x34] sm:$0xf]
    %v648 = vld [vmem:[#allocation7 + $0x38] sm:$0xf]
    %v649 = vld [vmem:[#allocation7 + $0x3c] sm:$0xf]
    %v650 = vld [vmem:[%s4] sm:$0x1]
    %v652 = vperm.slane %v650, 0
    %v670 = vunpack.c.l.b16 %v634
    %v671 = vunpack.c.l.b16 %v635
    %v672 = vunpack.c.l.b16 %v636
    %v673 = vunpack.c.l.b16 %v637
    %v674 = vunpack.c.l.b16 %v638
    %v675 = vunpack.c.l.b16 %v639
    %v676 = vunpack.c.l.b16 %v640
    %v677 = vunpack.c.l.b16 %v641
    %v678 = vunpack.c.l.b16 %v642
    %v679 = vunpack.c.l.b16 %v643
    %v680 = vunpack.c.l.b16 %v644
    %v681 = vunpack.c.l.b16 %v645
    %v682 = vunpack.c.l.b16 %v646
    %v683 = vunpack.c.l.b16 %v647
    %v684 = vunpack.c.l.b16 %v648
    %v685 = vunpack.c.l.b16 %v649
    %v686 = vpack.c.b16 %v671, %v670
    %v687 = vpack.c.b16 %v673, %v672
    %v688 = vpack.c.b16 %v675, %v674
    %v689 = vpack.c.b16 %v677, %v676
    %v690 = vpack.c.b16 %v679, %v678
    %v691 = vpack.c.b16 %v681, %v680
    %v692 = vpack.c.b16 %v683, %v682
    %v693 = vpack.c.b16 %v685, %v684
    %702 = vmatpush.bf16.msra.mxu0 %v693
    %703 = vmatpush.bf16.msra.mxu0 %v692
    %704 = vmatpush.bf16.msra.mxu0 %v691
    %705 = vmatpush.bf16.msra.mxu0 %v690
    %706 = vmatpush.bf16.msra.mxu0 %v689
    %707 = vmatpush.bf16.msra.mxu0 %v688
    %708 = vmatpush.bf16.msra.mxu0 %v687
    %709 = vmatpush.bf16.msra.mxu0 %v686
    %710 = vmatmul.bf16.gmra.mxu0 %v633
    %v711 = vpop.f32.mrf.mxu0
    %v712 = vadd.f32 %v652, %v711
    %v713 = vpop.f32.mrf.mxu0
    %v714 = vadd.f32 %v652, %v713
    %715 = vdwg.mxu0
    %v716 = vsub.f32 0.0, %v712
    %v717 = vsub.f32 0.0, %v714
    %v718 = vmul.f32 %v716, 1.442695
    %v719 = vpow.pop %v718
    %v720 = vmul.f32 %v717, 1.442695
    %v721 = vpow.pop %v720
    %v722 = vadd.f32 %v719, 1.0
    %v723 = vadd.f32 %v721, 1.0
    %v724 = vrcp.pop %v722
    %v725 = vrcp.pop %v723
    %v726 = vpack.c.bf16 %v725, %v724
    %v727 = vld [vmem:[#allocation8] sm:$0xf]
    %v728 = vld [vmem:[#allocation8 + $0x4] sm:$0xf]
    %v729 = vld [vmem:[#allocation8 + $0x8] sm:$0xf]
    %v730 = vld [vmem:[#allocation8 + $0xc] sm:$0xf]
    %v731 = vld [vmem:[#allocation8 + $0x10] sm:$0xf]
    %v732 = vld [vmem:[#allocation8 + $0x14] sm:$0xf]
    %v733 = vld [vmem:[#allocation8 + $0x18] sm:$0xf]
    %v734 = vld [vmem:[#allocation8 + $0x1c] sm:$0xf]
    %v735 = vld [vmem:[#allocation8 + $0x20] sm:$0xf]
    %v736 = vld [vmem:[#allocation8 + $0x24] sm:$0xf]
    %v737 = vld [vmem:[#allocation8 + $0x28] sm:$0xf]
    %v738 = vld [vmem:[#allocation8 + $0x2c] sm:$0xf]
    %v739 = vld [vmem:[#allocation8 + $0x30] sm:$0xf]
    %v740 = vld [vmem:[#allocation8 + $0x34] sm:$0xf]
    %v741 = vld [vmem:[#allocation8 + $0x38] sm:$0xf]
    %v742 = vld [vmem:[#allocation8 + $0x3c] sm:$0xf]
    %v743 = vld [vmem:[%s6] sm:$0x1]
    %v745 = vperm.slane %v743, 0
    %v763 = vunpack.c.l.b16 %v727
    %v764 = vunpack.c.l.b16 %v728
    %v765 = vunpack.c.l.b16 %v729
    %v766 = vunpack.c.l.b16 %v730
    %v767 = vunpack.c.l.b16 %v731
    %v768 = vunpack.c.l.b16 %v732
    %v769 = vunpack.c.l.b16 %v733
    %v770 = vunpack.c.l.b16 %v734
    %v771 = vunpack.c.l.b16 %v735
    %v772 = vunpack.c.l.b16 %v736
    %v773 = vunpack.c.l.b16 %v737
    %v774 = vunpack.c.l.b16 %v738
    %v775 = vunpack.c.l.b16 %v739
    %v776 = vunpack.c.l.b16 %v740
    %v777 = vunpack.c.l.b16 %v741
    %v778 = vunpack.c.l.b16 %v742
    %v779 = vpack.c.b16 %v764, %v763
    %v780 = vpack.c.b16 %v766, %v765
    %v781 = vpack.c.b16 %v768, %v767
    %v782 = vpack.c.b16 %v770, %v769
    %v783 = vpack.c.b16 %v772, %v771
    %v784 = vpack.c.b16 %v774, %v773
    %v785 = vpack.c.b16 %v776, %v775
    %v786 = vpack.c.b16 %v778, %v777
    %795 = vmatpush.bf16.msra.mxu0 %v786
    %796 = vmatpush.bf16.msra.mxu0 %v785
    %797 = vmatpush.bf16.msra.mxu0 %v784
    %798 = vmatpush.bf16.msra.mxu0 %v783
    %799 = vmatpush.bf16.msra.mxu0 %v782
    %800 = vmatpush.bf16.msra.mxu0 %v781
    %801 = vmatpush.bf16.msra.mxu0 %v780
    %802 = vmatpush.bf16.msra.mxu0 %v779
    %803 = vmatmul.bf16.gmra.mxu0 %v726
    %v804 = vpop.f32.mrf.mxu0
    %v805 = vadd.f32 %v745, %v804
    %v806 = vpop.f32.mrf.mxu0
    %v807 = vadd.f32 %v745, %v806
    %808 = vdwg.mxu0
    %v809 = vmax.f32 %v805, 0.0
    %v810 = vmax.f32 %v807, 0.0
    %v811 = vpack.c.bf16 %v810, %v809
    %v812 = vld [vmem:[#allocation10] sm:$0xf]
    %v813 = vld [vmem:[#allocation10 + $0x4] sm:$0xf]
    %v814 = vld [vmem:[#allocation10 + $0x8] sm:$0xf]
    %v815 = vld [vmem:[#allocation10 + $0xc] sm:$0xf]
    %v816 = vld [vmem:[#allocation10 + $0x10] sm:$0xf]
    %v817 = vld [vmem:[#allocation10 + $0x14] sm:$0xf]
    %v818 = vld [vmem:[#allocation10 + $0x18] sm:$0xf]
    %v819 = vld [vmem:[#allocation10 + $0x1c] sm:$0xf]
    %v820 = vld [vmem:[#allocation10 + $0x20] sm:$0xf]
    %v821 = vld [vmem:[#allocation10 + $0x24] sm:$0xf]
    %v822 = vld [vmem:[#allocation10 + $0x28] sm:$0xf]
    %v823 = vld [vmem:[#allocation10 + $0x2c] sm:$0xf]
    %v824 = vld [vmem:[#allocation10 + $0x30] sm:$0xf]
    %v825 = vld [vmem:[#allocation10 + $0x34] sm:$0xf]
    %v826 = vld [vmem:[#allocation10 + $0x38] sm:$0xf]
    %v827 = vld [vmem:[#allocation10 + $0x3c] sm:$0xf]
    %v828 = vld [vmem:[%s8] sm:$0x1]
    %v830 = vperm.slane %v828, 0
    %v848 = vunpack.c.l.b16 %v812
    %v849 = vunpack.c.l.b16 %v813
    %v850 = vunpack.c.l.b16 %v814
    %v851 = vunpack.c.l.b16 %v815
    %v852 = vunpack.c.l.b16 %v816
    %v853 = vunpack.c.l.b16 %v817
    %v854 = vunpack.c.l.b16 %v818
    %v855 = vunpack.c.l.b16 %v819
    %v856 = vunpack.c.l.b16 %v820
    %v857 = vunpack.c.l.b16 %v821
    %v858 = vunpack.c.l.b16 %v822
    %v859 = vunpack.c.l.b16 %v823
    %v860 = vunpack.c.l.b16 %v824
    %v861 = vunpack.c.l.b16 %v825
    %v862 = vunpack.c.l.b16 %v826
    %v863 = vunpack.c.l.b16 %v827
    %v864 = vpack.c.b16 %v849, %v848
    %v865 = vpack.c.b16 %v851, %v850
    %v866 = vpack.c.b16 %v853, %v852
    %v867 = vpack.c.b16 %v855, %v854
    %v868 = vpack.c.b16 %v857, %v856
    %v869 = vpack.c.b16 %v859, %v858
    %v870 = vpack.c.b16 %v861, %v860
    %v871 = vpack.c.b16 %v863, %v862
    %880 = vmatpush.bf16.msra.mxu0 %v871
    %881 = vmatpush.bf16.msra.mxu0 %v870
    %882 = vmatpush.bf16.msra.mxu0 %v869
    %883 = vmatpush.bf16.msra.mxu0 %v868
    %884 = vmatpush.bf16.msra.mxu0 %v867
    %885 = vmatpush.bf16.msra.mxu0 %v866
    %886 = vmatpush.bf16.msra.mxu0 %v865
    %887 = vmatpush.bf16.msra.mxu0 %v864
    %888 = vmatmul.bf16.gmra.mxu0 %v811
    %v889 = vpop.f32.mrf.mxu0
    %v890 = vadd.f32 %v830, %v889
    %v891 = vpop.f32.mrf.mxu0
    %v892 = vadd.f32 %v830, %v891
    %893 = vdwg.mxu0
    %v894 = vpack.c.bf16 %v890, %v890
    %v895 = vpack.c.bf16 %v892, %v892
    %896 = vst [vmem:[#allocation11] sm:$0xf] %v894
    %897 = vst [vmem:[#allocation11 + $0x4] sm:$0xf] %v895
    // Predicated region
    $region58: #{tpu_custom_call.1} parent=1 // pred_check
      _
    $region59: #{tpu_custom_call.1} parent=1 // pred_check_branch
      %899 = sbr.rel (0) target = $region61
    $region60: #{tpu_custom_call.1} parent=1 // pred_region
      %901 = vsyncadd [#allocation4], 64
      %s902 = sshll.u32 [#allocation11], 4
      %s903 = int_to_ptr.vmem [resolvable:$true] %s902
      %s904 = sshll.u32 %s9, 4
      %s905 = int_to_ptr.hbm [resolvable:$true] %s904
      %910 = dma.vmem_to_hbm [thread:$0]  %s903, 64, %s905, [#allocation4], 64, 64, 4
    $region61: #{tpu_custom_call.1} parent=1 // pred_fallthru
      _
    // Predicated region
    $region62: #{tpu_custom_call.1} parent=1 // pred_check
      _
    $region63: #{tpu_custom_call.1} parent=1 // pred_check_branch
      %912 = sbr.rel (0) target = $region65
    $region64: #{tpu_custom_call.1} parent=1 // pred_region
      %914 = dma.done [#allocation4], 128
    $region65: #{tpu_custom_call.1} parent=1 // pred_fallthru
      _
    %915 = vsyncpa [#allocation3], 1
    %916 = vsyncpa [#allocation6], 1
    %917 = vsyncpa [#allocation9], 1
    %918 = vsyncpa [#allocation4], 1

</llo_original>
